<compile_context>
chip_gen: v7x
topology: tpu7x:2x2x1
jax: 0.10.0
libtpu: 0.0.40
codegen_flags: <defaults>
</compile_context>

<pallas_src>
import functools

import numpy as np
import jax
import jax.numpy as jnp
from jax.experimental import pallas as pl
from jax.experimental.pallas import tpu as pltpu


_LANES = 128
_MAX_TILE_ROWS = 2048          # 2048*128*4 B = 1 MiB per input tile


# ----------------------------------------------------------------------------
# Dense kernel: sum over all cells of BCEWithLogits(obj_logit, 0)
# ----------------------------------------------------------------------------
def _obj_base_kernel(obj_ref, out_ref):
    z = obj_ref[...]                                   # (TR/8, 8, 128)
    # BCEWithLogits(z, 0) == max(z, 0) + log1p(exp(-|z|))  (single EUP pass)
    base = jnp.maximum(z, 0.0) + jnp.log1p(jnp.exp(-jnp.abs(z)))
    out_ref[0] = jnp.sum(base, axis=0)                 # (8, 128) vreg-wise adds


def _sum_obj_base(obj_flat):
    """Tiled, pipelined sum of BCE(obj, 0) over a flat (N,) logit vector."""
    n = obj_flat.shape[0]
    rows = -(-n // _LANES)
    tile_rows = min(_MAX_TILE_ROWS, ((rows + 7) // 8) * 8)
    num_tiles = -(-rows // tile_rows)
    padded = num_tiles * tile_rows * _LANES
    # pad with a large negative logit -> BCE(z, 0) underflows to exactly 0
    obj_pad = jnp.pad(obj_flat, (0, padded - n), constant_values=-1e4)
    tr8 = tile_rows // 8
    obj3d = obj_pad.reshape(num_tiles * tr8, 8, _LANES)

    out = pl.pallas_call(
        _obj_base_kernel,
        out_shape=jax.ShapeDtypeStruct((num_tiles, 8, _LANES), jnp.float32),
        grid=(num_tiles,),
        in_specs=[pl.BlockSpec((tr8, 8, _LANES), lambda i: (i, 0, 0))],
        out_specs=pl.BlockSpec((1, 8, _LANES), lambda i: (i, 0, 0)),
        compiler_params=pltpu.CompilerParams(
            dimension_semantics=("parallel",),
            vmem_limit_bytes=32 * 1024 * 1024),
    )(obj3d)
    return jnp.sum(out)


# ----------------------------------------------------------------------------
# Positive-cells kernel: obj correction + class BCE + box MSE (lane-padded)
# ----------------------------------------------------------------------------
def _positive_kernel(pred_ref, onehot_ref, txy_ref, twh_ref, mask_ref, out_ref,
                     *, w_pos, w_noobj, lambda_cls, lambda_box):
    pred = pred_ref[...]                 # (5+C, P_pad)
    mask = mask_ref[...]                 # (1, P_pad)   1 for real positives

    x = jax.nn.sigmoid(pred[0:1, :])
    y = jax.nn.sigmoid(pred[1:2, :])
    w = pred[2:3, :]
    h = pred[3:4, :]
    obj = pred[4:5, :]
    cls = pred[5:, :]                    # (C, P_pad)

    base_obj = jnp.maximum(obj, 0.0) + jnp.log1p(jnp.exp(-jnp.abs(obj)))
    # correction to the dense (l_obj+l_noobj)*sum(base) term at positive cells
    obj_corr = -(w_pos * obj + w_noobj * base_obj) * mask            # (1, P)

    onehot = onehot_ref[...]
    bce_cls = (jnp.maximum(cls, 0.0) - cls * onehot
               + jnp.log1p(jnp.exp(-jnp.abs(cls))))
    cls_lane = lambda_cls * jnp.sum(bce_cls, axis=0, keepdims=True) * mask

    txy = txy_ref[...]                   # (2, P_pad) precomputed on host
    twh = twh_ref[...]                   # (2, P_pad) precomputed on host
    box_sq = ((x - txy[0:1, :]) ** 2 + (y - txy[1:2, :]) ** 2
              + (w - twh[0:1, :]) ** 2 + (h - twh[1:2, :]) ** 2)
    box_lane = lambda_box * box_sq * mask

    out_ref[0:1, :] = obj_corr
    out_ref[1:2, :] = cls_lane
    out_ref[2:3, :] = box_lane


def _run_positive(pred_pos, onehot, txy, twh, mask, *, w_pos, w_noobj,
                  lambda_cls, lambda_box):
    kernel = functools.partial(
        _positive_kernel, w_pos=float(w_pos), w_noobj=float(w_noobj),
        lambda_cls=float(lambda_cls), lambda_box=float(lambda_box))
    p_pad = pred_pos.shape[1]
    vmem = lambda: pl.BlockSpec(memory_space=pltpu.MemorySpace.VMEM)
    out = pl.pallas_call(
        kernel,
        out_shape=jax.ShapeDtypeStruct((3, p_pad), jnp.float32),
        in_specs=[vmem() for _ in range(5)],
        out_specs=vmem(),
    )(pred_pos, onehot, txy, twh, mask)
    return jnp.sum(out, axis=1)          # (3,) = [obj_corr, cls_loss, box_loss]


# ----------------------------------------------------------------------------
# Host glue: target assignment (mirrors the reference python loop)
# ----------------------------------------------------------------------------
def _assign_targets_np(targets, B, A, G, num_classes, anchors_grid, stride, img_size):
    obj_mask = np.zeros((B, A, G, G), np.float32)
    cls_mask = np.zeros((B, A, G, G, num_classes), np.float32)
    tbox_grid = np.zeros((B, A, G, G, 4), np.float32)
    T = targets.shape[0]
    if T == 0:
        return obj_mask, cls_mask, tbox_grid

    tb = targets[:, 2:6].astype(np.float32).copy()
    tb_scaled = tb.copy()
    tb_scaled[:, :2] = tb_scaled[:, :2] * img_size / stride
    tb_scaled[:, 2:4] = tb_scaled[:, 2:4] * img_size / stride

    twh = tb_scaled[:, 2:4]
    awh = anchors_grid
    inter = np.minimum(twh[:, None, :], awh[None, :, :])
    inter_area = inter[:, :, 0] * inter[:, :, 1]
    t_area = twh[:, 0] * twh[:, 1]
    a_area = awh[:, 0] * awh[:, 1]
    iou = inter_area / (t_area[:, None] + a_area[None, :] - inter_area + 1e-6)
    best_anchors = np.argmax(iou, axis=1)

    t_cls = targets[:, 1].astype(np.int64)
    t_img = targets[:, 0].astype(np.int64)
    for j in range(T):
        a_idx = int(best_anchors[j])
        img_idx = int(t_img[j])
        if img_idx >= B:
            continue
        cx = int(tb_scaled[j, 0])
        cy = int(tb_scaled[j, 1])
        if cx >= G or cy >= G or cx < 0 or cy < 0:
            continue
        obj_mask[img_idx, a_idx, cy, cx] = 1.0
        c_idx = int(t_cls[j])
        if c_idx < num_classes:
            cls_mask[img_idx, a_idx, cy, cx, c_idx] = 1.0
        tbox_grid[img_idx, a_idx, cy, cx] = tb[j]
    return obj_mask, cls_mask, tbox_grid


def _gather_positive_np(obj_mask, cls_mask, tbox_grid, anchors_grid, stride):
    """Gather target-side data at positive cells and precompute xy/wh encodings."""
    pos = np.argwhere(obj_mask > 0.5)            # (P, 4): b, a, gy, gx
    if pos.shape[0] == 0:
        return None
    b, a, gy, gx = pos[:, 0], pos[:, 1], pos[:, 2], pos[:, 3]
    onehot = cls_mask[b, a, gy, gx, :].astype(np.float32)          # (P, C)
    tbox = tbox_grid[b, a, gy, gx, :].astype(np.float32)           # (P, 4) raw
    grid_xy = np.stack([gx, gy], axis=1).astype(np.float32)
    t_xy = tbox[:, :2] / stride - grid_xy                          # (P, 2)
    anc = anchors_grid[a]                                          # (P, 2)
    t_wh = np.log(tbox[:, 2:4] / (anc * stride) + 1e-6)            # (P, 2)
    return pos, onehot, t_xy.astype(np.float32), t_wh.astype(np.float32)


# ----------------------------------------------------------------------------
# YOLOLoss forward (wrapper around the Pallas kernels)
# ----------------------------------------------------------------------------
def yolo_loss_pallas(predictions, targets, *, num_classes, anchors, strides,
                     img_size=640):
    if not isinstance(predictions, (list, tuple)):
        predictions = [predictions]
    num_anchors = len(anchors[0]) // 2
    K = 5 + num_classes
    lambda_obj, lambda_noobj, lambda_cls, lambda_box = 1.0, 0.5, 0.5, 1.0

    targets_np = np.asarray(targets, dtype=np.float32)
    empty = (targets_np.shape[0] == 0)

    obj_flats = []
    pos_pred_list = []              # device (K, P_i) slabs, per scale
    pos_onehot, pos_txy, pos_twh = [], [], []

    for i, pred in enumerate(predictions):
        stride = float(strides[i])
        B, _, G, _ = pred.shape
        A = num_anchors
        anchors_grid = np.asarray(anchors[i], np.float32).reshape(-1, 2) / stride

        pred_r = jnp.asarray(pred, jnp.float32).reshape(B, A, K, G, G)

        # only the obj logits are streamed through HBM by the dense pass
        obj_flats.append(pred_r[:, :, 4, :, :].reshape(-1))

        if empty:
            continue

        # ---- host glue: target -> cell assignment + positive gather ----
        obj_mask, cls_mask, tbox_grid = _assign_targets_np(
            targets_np, B, A, G, num_classes, anchors_grid, stride, img_size)
        gathered = _gather_positive_np(obj_mask, cls_mask, tbox_grid,
                                       anchors_grid, stride)
        if gathered is None:
            continue
        pos, onehot_np, txy_np, twh_np = gathered
        b_i, a_i = jnp.asarray(pos[:, 0]), jnp.asarray(pos[:, 1])
        gy_i, gx_i = jnp.asarray(pos[:, 2]), jnp.asarray(pos[:, 3])
        pos_pred_list.append(pred_r[b_i, a_i, :, gy_i, gx_i].T)     # (K, P_i)
        pos_onehot.append(onehot_np.T)                              # (C, P_i)
        pos_txy.append(txy_np.T)                                    # (2, P_i)
        pos_twh.append(twh_np.T)                                    # (2, P_i)

    # ---- dense pass: single fused kernel over all scales' obj logits ----
    obj_all = obj_flats[0] if len(obj_flats) == 1 else jnp.concatenate(obj_flats)
    sum_base = _sum_obj_base(obj_all)

    total_cls = jnp.float32(0.0)
    total_box = jnp.float32(0.0)
    if empty:
        total_obj = lambda_noobj * sum_base
    else:
        total_obj = (lambda_obj + lambda_noobj) * sum_base
        if pos_pred_list:
            P = int(sum(p.shape[1] for p in pos_pred_list))
            P_pad = max(_LANES, -(-P // _LANES) * _LANES)
            pad_l = P_pad - P

            pred_pos = (pos_pred_list[0] if len(pos_pred_list) == 1
                        else jnp.concatenate(pos_pred_list, axis=1))
            pred_pos = jnp.pad(pred_pos, ((0, 0), (0, pad_l)))      # (K, P_pad)
            onehot = jnp.asarray(np.pad(np.concatenate(pos_onehot, axis=1),
                                        ((0, 0), (0, pad_l))))
            txy = jnp.asarray(np.pad(np.concatenate(pos_txy, axis=1),
                                     ((0, 0), (0, pad_l))))
            twh = jnp.asarray(np.pad(np.concatenate(pos_twh, axis=1),
                                     ((0, 0), (0, pad_l))))
            mask_np = np.zeros((1, P_pad), np.float32)
            mask_np[0, :P] = 1.0
            mask = jnp.asarray(mask_np)

            sums = _run_positive(pred_pos, onehot, txy, twh, mask,
                                 w_pos=lambda_obj, w_noobj=lambda_noobj,
                                 lambda_cls=lambda_cls, lambda_box=lambda_box)
            total_obj = total_obj + sums[0]
            total_cls = sums[1]
            total_box = sums[2]

    total = total_cls + total_box + total_obj
    # Stats kept as device scalars to avoid a forced host sync every step
    # (the reference calls .item(); callers may float() these if desired).
    stats = {"loss": total, "cls_loss": total_cls,
             "box_loss": total_box, "obj_loss": total_obj}
    return total, stats


# ----------------------------------------------------------------------------
# Pure-numpy reference (intended semantics of the PyTorch module)
# ----------------------------------------------------------------------------
def _reference_loss_np(preds, targets, num_classes, anchors, strides, img_size):
    def bce(z, t):
        return np.maximum(z, 0.0) - z * t + np.log1p(np.exp(-np.abs(z)))

    def sigm(z):
        return 1.0 / (1.0 + np.exp(-z))

    A = len(anchors[0]) // 2
    K = 5 + num_classes
    obj_l = cls_l = box_l = 0.0
    T = targets.shape[0]
    for i, pred in enumerate(preds):
        stride = float(strides[i])
        B, _, G, _ = pred.shape
        p = pred.reshape(B, A, K, G, G).transpose(0, 1, 3, 4, 2)
        x, y = sigm(p[..., 0]), sigm(p[..., 1])
        w, h = p[..., 2], p[..., 3]
        obj, cls = p[..., 4], p[..., 5:]
        if T == 0:
            obj_l += 0.5 * bce(obj, np.zeros_like(obj)).sum()
            continue
        anchors_grid = np.asarray(anchors[i], np.float32).reshape(-1, 2) / stride
        obj_mask, cls_mask, tbox_grid = _assign_targets_np(
            targets, B, A, G, num_classes, anchors_grid, stride, img_size)
        obj_l += bce(obj, obj_mask).sum()
        obj_l += 0.5 * (bce(obj, np.zeros_like(obj)) * (1.0 - obj_mask)).sum()
        cls_l += 0.5 * (bce(cls, cls_mask) * obj_mask[..., None]).sum()
        gyv, gxv = np.meshgrid(np.arange(G), np.arange(G), indexing="ij")
        grid = np.stack([gxv, gyv], -1).astype(np.float32).reshape(1, 1, G, G, 2)
        t_xy = tbox_grid[..., :2] / stride - grid
        t_wh = np.log(tbox_grid[..., 2:4] / (anchors_grid.reshape(1, A, 1, 1, 2) * stride) + 1e-6)
        box_l += ((x - t_xy[..., 0]) ** 2 * obj_mask).sum()
        box_l += ((y - t_xy[..., 1]) ** 2 * obj_mask).sum()
        box_l += ((w - t_wh[..., 0]) ** 2 * obj_mask).sum()
        box_l += ((h - t_wh[..., 1]) ** 2 * obj_mask).sum()
    return float(cls_l + box_l + obj_l)


# ----------------------------------------------------------------------------
if __name__ == "__main__":
    key = jax.random.PRNGKey(0)
    num_classes = 4
    anchors = [[10., 13., 16., 30., 33., 23.],
               [30., 61., 62., 45., 59., 119.]]
    strides = [8, 16]
    img_size = 128
    B, A = 2, 3
    K = 5 + num_classes

    k1, k2 = jax.random.split(key)
    pred_small = jax.random.normal(
        k1, (B, A * K, img_size // strides[0], img_size // strides[0]), jnp.float32)
    pred_medium = jax.random.normal(
        k2, (B, A * K, img_size // strides[1], img_size // strides[1]), jnp.float32)

    # targets: [batch_idx, class_idx, x, y, w, h], xywh normalized to [0, 1]
    targets = jnp.array([
        [0., 1., 0.25, 0.30, 0.20, 0.15],
        [0., 3., 0.70, 0.60, 0.10, 0.40],
        [1., 0., 0.50, 0.50, 0.35, 0.25],
    ], jnp.float32)

    total, stats = yolo_loss_pallas(
        [pred_small, pred_medium], targets,
        num_classes=num_classes, anchors=anchors, strides=strides,
        img_size=img_size)
    total = jax.block_until_ready(total)

    ref_total = _reference_loss_np(
        [np.asarray(pred_small), np.asarray(pred_medium)],
        np.asarray(targets), num_classes, anchors, strides, img_size)

    np.testing.assert_allclose(float(total), ref_total, rtol=2e-3, atol=1e-2)

    # also exercise the empty-targets path once
    total_e, _ = yolo_loss_pallas(
        [pred_small, pred_medium], jnp.zeros((0, 6), jnp.float32),
        num_classes=num_classes, anchors=anchors, strides=strides,
        img_size=img_size)
    total_e = jax.block_until_ready(total_e)
    ref_e = _reference_loss_np(
        [np.asarray(pred_small), np.asarray(pred_medium)],
        np.zeros((0, 6), np.float32), num_classes, anchors, strides, img_size)
    np.testing.assert_allclose(float(total_e), ref_e, rtol=2e-3, atol=1e-2)

    print("KERNEL_OK")
</pallas_src>

<mosaic_0001>
module attributes {stable_mosaic.version = 11 : i64} {
  func.func @_obj_base_kernel(%arg0: i32, %arg1: memref<2x8x128xf32, #tpu.memory_space<vmem>>, %arg2: memref<1x8x128xf32, #tpu.memory_space<vmem>>) attributes {dimension_semantics = [#tpu.dimension_semantics<parallel>], iteration_bounds = array<i64: 1>, scalar_prefetch = 0 : i64, scratch_operands = 0 : i64, tpu.core_type = #tpu.core_type<tc>, window_params = [{transform_indices = @transform_0, window_bounds = array<i64: 2, 8, 128>}, {transform_indices = @transform_1, window_bounds = array<i64: 1, 8, 128>}]} {
    %c0 = arith.constant 0 : index
    %c0_0 = arith.constant 0 : index
    %c0_1 = arith.constant 0 : index
    %0 = vector.load %arg1[%c0, %c0_0, %c0_1] : memref<2x8x128xf32, #tpu.memory_space<vmem>>, vector<2x8x128xf32>
    %cst = arith.constant 0.000000e+00 : f32
    %1 = vector.broadcast %cst : f32 to vector<2x8x128xf32>
    %2 = arith.maximumf %0, %1 : vector<2x8x128xf32>
    %3 = math.absf %0 : vector<2x8x128xf32>
    %cst_2 = arith.constant 0.000000e+00 : f32
    %4 = vector.broadcast %cst_2 : f32 to vector<2x8x128xf32>
    %5 = arith.subf %4, %3 : vector<2x8x128xf32>
    %6 = math.exp %5 : vector<2x8x128xf32>
    %7 = math.log1p %6 : vector<2x8x128xf32>
    %8 = arith.addf %2, %7 : vector<2x8x128xf32>
    %cst_3 = arith.constant dense<0.000000e+00> : vector<8x128xf32>
    %9 = vector.multi_reduction <add>, %8, %cst_3 [0] : vector<2x8x128xf32> to vector<8x128xf32>
    %c0_4 = arith.constant 0 : index
    %c0_5 = arith.constant 0 : index
    %c0_6 = arith.constant 0 : index
    %10 = vector.load %arg2[%c0_4, %c0_5, %c0_6] : memref<1x8x128xf32, #tpu.memory_space<vmem>>, vector<1x8x128xf32>
    %11 = vector.shape_cast %10 : vector<1x8x128xf32> to vector<8x128xf32>
    %12 = vector.shape_cast %9 : vector<8x128xf32> to vector<1x8x128xf32>
    tpu.vector_store %arg2[%c0_4, %c0_5, %c0_6], %12 {strides = array<i32>} : memref<1x8x128xf32, #tpu.memory_space<vmem>>, vector<1x8x128xf32>,
    return
  }
  func.func @transform_0(%arg0: i32) -> (i32, i32, i32) {
    %c0_i32 = arith.constant 0 : i32
    %c0_i32_0 = arith.constant 0 : i32
    %c0_i32_1 = arith.constant 0 : i32
    return %arg0, %c0_i32, %c0_i32_0 : i32, i32, i32
  }
  func.func @transform_1(%arg0: i32) -> (i32, i32, i32) {
    %c0_i32 = arith.constant 0 : i32
    %c0_i32_0 = arith.constant 0 : i32
    %c0_i32_1 = arith.constant 0 : i32
    return %arg0, %c0_i32, %c0_i32_0 : i32, i32, i32
  }
}

</mosaic_0001>

<llo_original>
// kernel: tpu_custom_call.1
$region0: #{tpu_custom_call.1}
  #allocation0 [shape = 'u32[]', space=smem, size = 0x4, offset = 0x4, fixed_abs, tag = 'smem constant byte address 0x4 - core index']
  #allocation1 [shape = 'u32[144,128]{1,0:T(1,128)}', space=vmem, size = 0x12000, scoped, tag = 'internal scratch']
  %s0 = inlined_call_operand.hbm [shape: f32[2,8,128], index: 0, kind: input, shape index: {}]
  %s1 = inlined_call_operand.hbm [shape: f32[1,8,128], index: 1, kind: output, shape index: {}]
  %s2 = sld [smem:[#allocation0]]
  $region18: #{tpu_custom_call.1} parent=0
    _
  %s4 = ssub.s32 1, %s2
  %s5 = scalar_select 0, %s4, %s2
  $region1: #{tpu_custom_call.1} parent=0
    #allocation2 [shape = 'u8[8192]{0}', space=vmem, size = 0x2000, scoped, tag = 'input window, operand 0, single buffered']
    #allocation3 [shape = 's32[1]{0}', space=sflag, size = 0x4, scoped, tag = 'scoped memory for tpu_custom_call.1']
    #allocation4 [shape = 's32[1]{0}', space=sflag, size = 0x4, scoped, tag = 'scoped memory for tpu_custom_call.1']
    #allocation5 [shape = 'u8[4096]{0}', space=vmem, size = 0x1000, scoped, tag = 'output window, operand 0, single buffered']
    %6 = vsyncpa [#allocation3], 0
    %7 = vsyncpa [#allocation4], 0
    // Predicated region
    $region2: #{tpu_custom_call.1} parent=1 // pred_check
      _
    $region3: #{tpu_custom_call.1} parent=1 // pred_check_branch
      %9 = sbr.rel (0) target = $region5
    $region4: #{tpu_custom_call.1} parent=1 // pred_region
      %s11 = ssub.s32 256, 256
      %12 = vsyncadd [#allocation3], %s11
      %s13 = sshll.u32 [#allocation2], 4
      %s14 = int_to_ptr.vmem [resolvable:$true] %s13
      %19 = dma.hbm_to_vmem [thread:$0]  %s0, 256, %s14, [#allocation3], 128, 128, 8
    $region5: #{tpu_custom_call.1} parent=1 // pred_fallthru
      _
    // Predicated region
    $region6: #{tpu_custom_call.1} parent=1 // pred_check
      _
    $region7: #{tpu_custom_call.1} parent=1 // pred_check_branch
      %21 = sbr.rel (0) target = $region9
    $region8: #{tpu_custom_call.1} parent=1 // pred_region
      %22 = dma.done [#allocation3], 256
    $region9: #{tpu_custom_call.1} parent=1 // pred_fallthru
      _
    %v23 = vld [vmem:[#allocation2] sm:$0xff]
    %v24 = vld [vmem:[#allocation2 + $0x8] sm:$0xff]
    %v25 = vmax.f32 %v23, 0.0
    %v26 = vmax.f32 %v24, 0.0
    %v27 = vand.u32 2147483647, %v23
    %v28 = vand.u32 2147483647, %v24
    %v29 = vsub.f32 0.0, %v27
    %v30 = vsub.f32 0.0, %v28
    %v31 = vmul.f32 %v29, 1.442695
    %v32 = vpow.pop %v31
    %v33 = vmul.f32 %v30, 1.442695
    %v34 = vpow.pop %v33
    %v35 = vadd.f32 %v32, 1.0
    %v36 = vlog2.pop %v35
    %v37 = vmul.f32 %v36, 0.6931472
    %v38 = vmul.f32 -0.5, %v32
    %v39 = vadd.f32 %v38, 1.0
    %v40 = vmul.f32 %v39, %v32
    %v41 = vand.u32 2147483647, %v32
    %vm42 = vcmp.lt.f32.partialorder %v41, 0.0004427343
    %v43 = vsel %vm42, %v40, %v37
    %v44 = vadd.f32 %v34, 1.0
    %v45 = vlog2.pop %v44
    %v46 = vmul.f32 %v45, 0.6931472
    %v47 = vmul.f32 -0.5, %v34
    %v48 = vadd.f32 %v47, 1.0
    %v49 = vmul.f32 %v48, %v34
    %v50 = vand.u32 2147483647, %v34
    %vm51 = vcmp.lt.f32.partialorder %v50, 0.0004427343
    %v52 = vsel %vm51, %v49, %v46
    %v53 = vadd.f32 %v25, %v43
    %v54 = vadd.f32 %v26, %v52
    %v55 = vadd.f32 %v53, %v54
    %56 = vst [vmem:[#allocation5] sm:$0xff] %v55
    // Predicated region
    $region10: #{tpu_custom_call.1} parent=1 // pred_check
      _
    $region11: #{tpu_custom_call.1} parent=1 // pred_check_branch
      %58 = sbr.rel (0) target = $region13
    $region12: #{tpu_custom_call.1} parent=1 // pred_region
      %s60 = ssub.s32 128, 128
      %61 = vsyncadd [#allocation4], %s60
      %s63 = sshll.u32 [#allocation5], 4
      %s64 = int_to_ptr.vmem [resolvable:$true] %s63
      %66 = dma.vmem_to_hbm [thread:$0]  %s64, 128, %s1, [#allocation4]
    $region13: #{tpu_custom_call.1} parent=1 // pred_fallthru
      _
    // Predicated region
    $region14: #{tpu_custom_call.1} parent=1 // pred_check
      _
    $region15: #{tpu_custom_call.1} parent=1 // pred_check_branch
      %68 = sbr.rel (0) target = $region17
    $region16: #{tpu_custom_call.1} parent=1 // pred_region
      %69 = dma.done [#allocation4], 128
    $region17: #{tpu_custom_call.1} parent=1 // pred_fallthru
      _
    %70 = vsyncpa [#allocation3], 1
    %71 = vsyncpa [#allocation4], 1

</llo_original>
